<compile_context>
chip_gen: v7x
topology: tpu7x:2x2x1
jax: 0.10.0
libtpu: 0.0.40
codegen_flags: <defaults>
</compile_context>

<pallas_src>
import jax
import jax.numpy as jnp
from jax import lax
from jax.experimental import pallas as pl
from jax.experimental.pallas import tpu as pltpu

_LANE = 128
_SUBLANE = 8


def _device_kind():
    try:
        return jax.devices()[0].device_kind.lower()
    except Exception:
        return ""


def _make_kernel(valid_rows, br, blocks_per_core, unroll):
    """Builds the fused sums kernel.

    Output block acc_ref: (3, 8, 128) f32, resident across the block axis.
      acc[0] = per-lane partial sums of x * t     (intersection)
      acc[1] = per-lane partial sums of x + t     (dice denominator)
      acc[2] = per-lane partial sums of BCE terms
    """
    n_chunks = br // _SUBLANE

    def kernel(x_ref, t_ref, acc_ref):
        c = pl.program_id(0)
        i = pl.program_id(1)

        @pl.when(i == 0)
        def _init():
            acc_ref[...] = jnp.zeros_like(acc_ref)

        # Unclamped global row offset of this block (may exceed valid_rows for
        # the duplicate/ragged blocks; those rows are masked out below).
        block_row0 = (c * blocks_per_core + i) * br

        def run(masked):
            def body(j, carry):
                s_xt, s_sum, s_bce = carry
                r0 = j * _SUBLANE
                r0h = pl.multiple_of(r0, _SUBLANE)
                x = x_ref[pl.ds(r0h, _SUBLANE), :].astype(jnp.float32)
                t = t_ref[pl.ds(r0h, _SUBLANE), :].astype(jnp.float32)
                if masked:
                    row = (block_row0 + r0
                           + lax.broadcasted_iota(jnp.int32, (_SUBLANE, _LANE), 0))
                    valid = row < valid_rows
                    # Sanitize BEFORE the logs so garbage rows of a partial
                    # block can never produce NaN/Inf that leaks into the sums.
                    x = jnp.where(valid, x, 0.0)
                    t = jnp.where(valid, t, 0.0)
                # F.binary_cross_entropy clamps log() at -100 (PyTorch semantics);
                # this also makes explicit zero padding contribute exactly 0.
                log_x = jnp.maximum(jnp.log(x), -100.0)
                log_1mx = jnp.maximum(jnp.log(1.0 - x), -100.0)
                bce = -(log_1mx + t * (log_x - log_1mx))
                return (s_xt + x * t, s_sum + (x + t), s_bce + bce)

            z = jnp.zeros((_SUBLANE, _LANE), jnp.float32)
            s_xt, s_sum, s_bce = lax.fori_loop(
                0, n_chunks, body, (z, z, z), unroll=unroll)
            acc_ref[0, :, :] += s_xt
            acc_ref[1, :, :] += s_sum
            acc_ref[2, :, :] += s_bce

        block_full = block_row0 + br <= valid_rows

        @pl.when(block_full)
        def _full():
            run(masked=False)          # hot path: zero masking overhead

        @pl.when(jnp.logical_not(block_full))
        def _ragged():
            run(masked=True)           # only the last / duplicate block

    return kernel


def _reduction_sums(inputs, targets, block_rows=None, num_cores=None):
    """Returns ((ncores, 3, 8, 128) f32 per-lane partial sums, n_elements)."""
    assert inputs.shape == targets.shape
    n = int(inputs.size)
    kind = _device_kind()
    if num_cores is None:
        num_cores = 2 if "v7" in kind else 1          # v5e / v6e: single TC
    if block_rows is None:
        block_rows = 8192 if "v7" in kind else (4096 if "v6" in kind else 2048)
    block_rows = max(_SUBLANE, (block_rows // _SUBLANE) * _SUBLANE)

    x = inputs.reshape(-1)
    t = targets.reshape(-1)

    # Lane-dense (rows, 128) slab.  Pad only when n isn't 128-aligned (tiny
    # tail, < 1024 elems incl. the rows>=8 floor); padded zeros contribute 0
    # to every accumulated sum thanks to the -100 log clamp.
    rows = max(-(-n // _LANE), _SUBLANE)
    padded_n = rows * _LANE
    if padded_n != n:
        x = jnp.pad(x, (0, padded_n - n))
        t = jnp.pad(t, (0, padded_n - n))
    x2 = x.reshape(rows, _LANE)
    t2 = t.reshape(rows, _LANE)

    br = min(block_rows, (rows // _SUBLANE) * _SUBLANE)   # multiple of 8
    nblocks = -(-rows // br)
    ncores = min(num_cores, nblocks)
    blocks_per_core = -(-nblocks // ncores)

    def in_map(c, i):
        # Clamp so an over-run core DMA's a real block; its contribution is
        # zeroed by the in-kernel row mask (unclamped index drives the mask).
        return (jnp.minimum(c * blocks_per_core + i, nblocks - 1), 0)

    unroll = max(1, min(8, br // _SUBLANE))
    kernel = _make_kernel(rows, br, blocks_per_core, unroll)

    itemsize = x2.dtype.itemsize + t2.dtype.itemsize
    vmem_limit = max(2 * br * _LANE * itemsize + (4 << 20), 16 << 20)

    cost = pl.CostEstimate(
        flops=int(12 * padded_n),
        transcendentals=int(2 * padded_n),
        bytes_accessed=int(x2.size * x2.dtype.itemsize
                           + t2.size * t2.dtype.itemsize
                           + ncores * 3 * _SUBLANE * _LANE * 4))

    if ncores > 1:
        dim_sem = (pltpu.CORE_PARALLEL, pltpu.ARBITRARY)   # real 2-TC split (v7x)
    else:
        dim_sem = (pltpu.ARBITRARY, pltpu.ARBITRARY)

    partial = pl.pallas_call(
        kernel,
        out_shape=jax.ShapeDtypeStruct((ncores, 3, _SUBLANE, _LANE), jnp.float32),
        grid_spec=pltpu.PrefetchScalarGridSpec(
            num_scalar_prefetch=0,
            grid=(ncores, blocks_per_core),
            in_specs=[pl.BlockSpec((br, _LANE), in_map),
                      pl.BlockSpec((br, _LANE), in_map)],
            out_specs=pl.BlockSpec((None, 3, _SUBLANE, _LANE),
                                   lambda c, i: (c, 0, 0, 0)),
        ),
        compiler_params=pltpu.CompilerParams(
            dimension_semantics=dim_sem,
            vmem_limit_bytes=int(vmem_limit)),
        cost_estimate=cost,
    )(x2, t2)
    return partial, n


def binary_mask_loss(inputs, targets, weight=0.8, smooth=1e-6,
                     block_rows=None, num_cores=None):
    """Matches BinaryMaskLoss.forward: weight*dice_loss + (1-weight)*focal_loss."""
    partial, n = _reduction_sums(inputs, targets, block_rows, num_cores)
    sums = jnp.sum(partial, axis=(0, 2, 3), dtype=jnp.float32)  # tiny final reduce
    intersection = sums[0]
    xt_sum = sums[1]
    bce_sum = sums[2]

    dice = (2.0 * intersection + smooth) / (xt_sum + smooth)
    dice_loss = 1.0 - dice

    bce = bce_sum * jnp.float32(1.0 / n)          # reduction='mean'; 1/n in f64 on host
    bce_exp = jnp.exp(-bce)
    focal_loss = 0.8 * (1.0 - bce_exp) ** 2 * bce  # focal alpha 0.8 is the module's constant

    return weight * dice_loss + (1.0 - weight) * focal_loss


def _ref_loss(inputs, targets, weight=0.8, smooth=1e-6):
    inter = jnp.sum(inputs * targets)
    dice = (2.0 * inter + smooth) / (jnp.sum(inputs) + jnp.sum(targets) + smooth)
    bce = jnp.mean(-(targets * jnp.log(inputs)
                     + (1.0 - targets) * jnp.log(1.0 - inputs)))
    focal = 0.8 * (1.0 - jnp.exp(-bce)) ** 2 * bce
    return weight * (1.0 - dice) + (1.0 - weight) * focal


if __name__ == "__main__":
    key = jax.random.PRNGKey(0)
    k1, k2, k3, k4, k5, k6 = jax.random.split(key, 6)

    # 1) Main case: NCHW mask batch, 128-aligned (no pad, single full block).
    shape = (2, 4, 16, 16)
    inputs = jax.nn.sigmoid(jax.random.normal(k1, shape, dtype=jnp.float32))
    targets = (jax.random.uniform(k2, shape) > 0.5).astype(jnp.float32)
    loss = jax.block_until_ready(binary_mask_loss(inputs, targets))
    ref = _ref_loss(inputs, targets)
    assert jnp.allclose(loss, ref, atol=1e-5, rtol=1e-5), (loss, ref)

    # 2) Misaligned n (not a multiple of 128): exercises the tiny tail-pad path.
    shape2 = (1, 3, 10, 17)
    inputs2 = jax.nn.sigmoid(jax.random.normal(k3, shape2, dtype=jnp.float32))
    targets2 = (jax.random.uniform(k4, shape2) > 0.5).astype(jnp.float32)
    loss2 = jax.block_until_ready(binary_mask_loss(inputs2, targets2))
    ref2 = _ref_loss(inputs2, targets2)
    assert jnp.allclose(loss2, ref2, atol=1e-5, rtol=1e-5), (loss2, ref2)

    # 3) Multi-block with a ragged last block: in-kernel mask path, no wrapper pad.
    shape3 = (1, 1, 24, 128)   # rows=24, block_rows=16 -> last block half out-of-range
    inputs3 = jax.nn.sigmoid(jax.random.normal(k5, shape3, dtype=jnp.float32))
    targets3 = (jax.random.uniform(k6, shape3) > 0.5).astype(jnp.float32)
    loss3 = jax.block_until_ready(binary_mask_loss(inputs3, targets3, block_rows=16))
    ref3 = _ref_loss(inputs3, targets3)
    assert jnp.allclose(loss3, ref3, atol=1e-5, rtol=1e-5), (loss3, ref3)

    # 4) Native narrow-dtype streaming (bf16 probs / bf16 binary mask), cast in-kernel.
    inputs4 = inputs.astype(jnp.bfloat16)
    targets4 = targets.astype(jnp.bfloat16)
    loss4 = jax.block_until_ready(binary_mask_loss(inputs4, targets4))
    ref4 = _ref_loss(inputs4.astype(jnp.float32), targets4.astype(jnp.float32))
    assert jnp.allclose(loss4, ref4, atol=1e-5, rtol=1e-5), (loss4, ref4)

    # 5) Multi-block accumulation across several grid steps.
    loss5 = jax.block_until_ready(binary_mask_loss(inputs, targets, block_rows=8))
    assert jnp.allclose(loss5, ref, atol=1e-5, rtol=1e-5), (loss5, ref)

    print("KERNEL_OK")
</pallas_src>

<mosaic_0001>
module attributes {stable_mosaic.version = 11 : i64} {
  func.func @kernel(%arg0: i32, %arg1: i32, %arg2: memref<16x128xf32, #tpu.memory_space<vmem>>, %arg3: memref<16x128xf32, #tpu.memory_space<vmem>>, %arg4: memref<1x3x8x128xf32, #tpu.memory_space<vmem>>) attributes {dimension_semantics = [#tpu.dimension_semantics<arbitrary>, #tpu.dimension_semantics<arbitrary>], iteration_bounds = array<i64: 1, 1>, scalar_prefetch = 0 : i64, scratch_operands = 0 : i64, tpu.core_type = #tpu.core_type<tc>, window_params = [{transform_indices = @transform_0, window_bounds = array<i64: 16, 128>}, {transform_indices = @transform_1, window_bounds = array<i64: 16, 128>}, {transform_indices = @transform_2, window_bounds = array<i64: 1, 3, 8, 128>}]} {
    %c0_i32 = arith.constant 0 : i32
    %0 = arith.cmpi eq, %arg1, %c0_i32 : i32
    %1 = arith.extui %0 : i1 to i32
    %c0_i32_0 = arith.constant 0 : i32
    %2 = arith.cmpi ne, %1, %c0_i32_0 : i32
    scf.if %2 {
      %cst = arith.constant 0.000000e+00 : f32
      %13 = vector.broadcast %cst : f32 to vector<3x8x128xf32>
      %c0 = arith.constant 0 : index
      %c0_5 = arith.constant 0 : index
      %c0_6 = arith.constant 0 : index
      %c0_7 = arith.constant 0 : index
      %14 = vector.load %arg4[%c0, %c0_5, %c0_6, %c0_7] : memref<1x3x8x128xf32, #tpu.memory_space<vmem>>, vector<1x3x8x128xf32>
      %15 = vector.shape_cast %14 : vector<1x3x8x128xf32> to vector<3x8x128xf32>
      %16 = vector.shape_cast %13 : vector<3x8x128xf32> to vector<1x3x8x128xf32>
      tpu.vector_store %arg4[%c0, %c0_5, %c0_6, %c0_7], %16 {strides = array<i32>} : memref<1x3x8x128xf32, #tpu.memory_space<vmem>>, vector<1x3x8x128xf32>,
    } else {
    }
    %c1_i32 = arith.constant 1 : i32
    %3 = arith.muli %arg0, %c1_i32 : i32
    %4 = arith.addi %3, %arg1 : i32
    %c16_i32 = arith.constant 16 : i32
    %5 = arith.muli %4, %c16_i32 : i32
    %c16_i32_1 = arith.constant 16 : i32
    %6 = arith.addi %5, %c16_i32_1 : i32
    %c16_i32_2 = arith.constant 16 : i32
    %7 = arith.cmpi sle, %6, %c16_i32_2 : i32
    %8 = arith.extui %7 : i1 to i32
    %c0_i32_3 = arith.constant 0 : i32
    %9 = arith.cmpi ne, %8, %c0_i32_3 : i32
    scf.if %9 {
      %cst = arith.constant 0.000000e+00 : f32
      %13 = vector.broadcast %cst : f32 to vector<8x128xf32>
      %c0_i32_5 = arith.constant 0 : i32
      %c8_i32 = arith.constant 8 : i32
      %14 = arith.muli %c0_i32_5, %c8_i32 : i32
      %15 = tpu.assume_multiple %14, 8 : i32
      %16 = arith.index_cast %15 : i32 to index
      %c0 = arith.constant 0 : index
      %17 = vector.load %arg2[%16, %c0] : memref<16x128xf32, #tpu.memory_space<vmem>>, vector<8x128xf32>
      %18 = arith.index_cast %15 : i32 to index
      %c0_6 = arith.constant 0 : index
      %19 = vector.load %arg3[%18, %c0_6] : memref<16x128xf32, #tpu.memory_space<vmem>>, vector<8x128xf32>
      %20 = math.log %17 : vector<8x128xf32>
      %cst_7 = arith.constant -1.000000e+02 : f32
      %21 = vector.broadcast %cst_7 : f32 to vector<8x128xf32>
      %22 = arith.maximumf %20, %21 : vector<8x128xf32>
      %cst_8 = arith.constant 1.000000e+00 : f32
      %23 = vector.broadcast %cst_8 : f32 to vector<8x128xf32>
      %24 = arith.subf %23, %17 : vector<8x128xf32>
      %25 = math.log %24 : vector<8x128xf32>
      %cst_9 = arith.constant -1.000000e+02 : f32
      %26 = vector.broadcast %cst_9 : f32 to vector<8x128xf32>
      %27 = arith.maximumf %25, %26 : vector<8x128xf32>
      %28 = arith.subf %22, %27 : vector<8x128xf32>
      %29 = arith.mulf %19, %28 : vector<8x128xf32>
      %30 = arith.addf %27, %29 : vector<8x128xf32>
      %cst_10 = arith.constant 0.000000e+00 : f32
      %31 = vector.broadcast %cst_10 : f32 to vector<8x128xf32>
      %32 = arith.subf %31, %30 : vector<8x128xf32>
      %33 = arith.mulf %17, %19 : vector<8x128xf32>
      %34 = arith.addf %13, %33 : vector<8x128xf32>
      %35 = arith.addf %17, %19 : vector<8x128xf32>
      %36 = arith.addf %13, %35 : vector<8x128xf32>
      %37 = arith.addf %13, %32 : vector<8x128xf32>
      %c1_i32_11 = arith.constant 1 : i32
      %c8_i32_12 = arith.constant 8 : i32
      %38 = arith.muli %c1_i32_11, %c8_i32_12 : i32
      %39 = tpu.assume_multiple %38, 8 : i32
      %40 = arith.index_cast %39 : i32 to index
      %c0_13 = arith.constant 0 : index
      %41 = vector.load %arg2[%40, %c0_13] : memref<16x128xf32, #tpu.memory_space<vmem>>, vector<8x128xf32>
      %42 = arith.index_cast %39 : i32 to index
      %c0_14 = arith.constant 0 : index
      %43 = vector.load %arg3[%42, %c0_14] : memref<16x128xf32, #tpu.memory_space<vmem>>, vector<8x128xf32>
      %44 = math.log %41 : vector<8x128xf32>
      %cst_15 = arith.constant -1.000000e+02 : f32
      %45 = vector.broadcast %cst_15 : f32 to vector<8x128xf32>
      %46 = arith.maximumf %44, %45 : vector<8x128xf32>
      %cst_16 = arith.constant 1.000000e+00 : f32
      %47 = vector.broadcast %cst_16 : f32 to vector<8x128xf32>
      %48 = arith.subf %47, %41 : vector<8x128xf32>
      %49 = math.log %48 : vector<8x128xf32>
      %cst_17 = arith.constant -1.000000e+02 : f32
      %50 = vector.broadcast %cst_17 : f32 to vector<8x128xf32>
      %51 = arith.maximumf %49, %50 : vector<8x128xf32>
      %52 = arith.subf %46, %51 : vector<8x128xf32>
      %53 = arith.mulf %43, %52 : vector<8x128xf32>
      %54 = arith.addf %51, %53 : vector<8x128xf32>
      %cst_18 = arith.constant 0.000000e+00 : f32
      %55 = vector.broadcast %cst_18 : f32 to vector<8x128xf32>
      %56 = arith.subf %55, %54 : vector<8x128xf32>
      %57 = arith.mulf %41, %43 : vector<8x128xf32>
      %58 = arith.addf %34, %57 : vector<8x128xf32>
      %59 = arith.addf %41, %43 : vector<8x128xf32>
      %60 = arith.addf %36, %59 : vector<8x128xf32>
      %61 = arith.addf %37, %56 : vector<8x128xf32>
      %c2_i32 = arith.constant 2 : i32
      %c0_19 = arith.constant 0 : index
      %c0_20 = arith.constant 0 : index
      %c0_21 = arith.constant 0 : index
      %c0_22 = arith.constant 0 : index
      %62 = vector.load %arg4[%c0_19, %c0_20, %c0_21, %c0_22] : memref<1x3x8x128xf32, #tpu.memory_space<vmem>>, vector<1x1x8x128xf32>
      %63 = vector.shape_cast %62 : vector<1x1x8x128xf32> to vector<8x128xf32>
      %64 = arith.addf %63, %58 : vector<8x128xf32>
      %c0_23 = arith.constant 0 : index
      %c0_24 = arith.constant 0 : index
      %c0_25 = arith.constant 0 : index
      %c0_26 = arith.constant 0 : index
      %65 = vector.load %arg4[%c0_23, %c0_24, %c0_25, %c0_26] : memref<1x3x8x128xf32, #tpu.memory_space<vmem>>, vector<1x1x8x128xf32>
      %66 = vector.shape_cast %65 : vector<1x1x8x128xf32> to vector<8x128xf32>
      %67 = vector.shape_cast %64 : vector<8x128xf32> to vector<1x1x8x128xf32>
      tpu.vector_store %arg4[%c0_23, %c0_24, %c0_25, %c0_26], %67 {strides = array<i32>} : memref<1x3x8x128xf32, #tpu.memory_space<vmem>>, vector<1x1x8x128xf32>,
      %c0_27 = arith.constant 0 : index
      %c1 = arith.constant 1 : index
      %c0_28 = arith.constant 0 : index
      %c0_29 = arith.constant 0 : index
      %68 = vector.load %arg4[%c0_27, %c1, %c0_28, %c0_29] : memref<1x3x8x128xf32, #tpu.memory_space<vmem>>, vector<1x1x8x128xf32>
      %69 = vector.shape_cast %68 : vector<1x1x8x128xf32> to vector<8x128xf32>
      %70 = arith.addf %69, %60 : vector<8x128xf32>
      %c0_30 = arith.constant 0 : index
      %c1_31 = arith.constant 1 : index
      %c0_32 = arith.constant 0 : index
      %c0_33 = arith.constant 0 : index
      %71 = vector.load %arg4[%c0_30, %c1_31, %c0_32, %c0_33] : memref<1x3x8x128xf32, #tpu.memory_space<vmem>>, vector<1x1x8x128xf32>
      %72 = vector.shape_cast %71 : vector<1x1x8x128xf32> to vector<8x128xf32>
      %73 = vector.shape_cast %70 : vector<8x128xf32> to vector<1x1x8x128xf32>
      tpu.vector_store %arg4[%c0_30, %c1_31, %c0_32, %c0_33], %73 {strides = array<i32>} : memref<1x3x8x128xf32, #tpu.memory_space<vmem>>, vector<1x1x8x128xf32>,
      %c0_34 = arith.constant 0 : index
      %c2 = arith.constant 2 : index
      %c0_35 = arith.constant 0 : index
      %c0_36 = arith.constant 0 : index
      %74 = vector.load %arg4[%c0_34, %c2, %c0_35, %c0_36] : memref<1x3x8x128xf32, #tpu.memory_space<vmem>>, vector<1x1x8x128xf32>
      %75 = vector.shape_cast %74 : vector<1x1x8x128xf32> to vector<8x128xf32>
      %76 = arith.addf %75, %61 : vector<8x128xf32>
      %c0_37 = arith.constant 0 : index
      %c2_38 = arith.constant 2 : index
      %c0_39 = arith.constant 0 : index
      %c0_40 = arith.constant 0 : index
      %77 = vector.load %arg4[%c0_37, %c2_38, %c0_39, %c0_40] : memref<1x3x8x128xf32, #tpu.memory_space<vmem>>, vector<1x1x8x128xf32>
      %78 = vector.shape_cast %77 : vector<1x1x8x128xf32> to vector<8x128xf32>
      %79 = vector.shape_cast %76 : vector<8x128xf32> to vector<1x1x8x128xf32>
      tpu.vector_store %arg4[%c0_37, %c2_38, %c0_39, %c0_40], %79 {strides = array<i32>} : memref<1x3x8x128xf32, #tpu.memory_space<vmem>>, vector<1x1x8x128xf32>,
    } else {
    }
    %true = arith.constant true
    %10 = arith.xori %7, %true : i1
    %11 = arith.extui %10 : i1 to i32
    %c0_i32_4 = arith.constant 0 : i32
    %12 = arith.cmpi ne, %11, %c0_i32_4 : i32
    scf.if %12 {
      %cst = arith.constant 0.000000e+00 : f32
      %13 = vector.broadcast %cst : f32 to vector<8x128xf32>
      %c0_i32_5 = arith.constant 0 : i32
      %c8_i32 = arith.constant 8 : i32
      %14 = arith.muli %c0_i32_5, %c8_i32 : i32
      %15 = tpu.assume_multiple %14, 8 : i32
      %16 = arith.index_cast %15 : i32 to index
      %c0 = arith.constant 0 : index
      %17 = vector.load %arg2[%16, %c0] : memref<16x128xf32, #tpu.memory_space<vmem>>, vector<8x128xf32>
      %18 = arith.index_cast %15 : i32 to index
      %c0_6 = arith.constant 0 : index
      %19 = vector.load %arg3[%18, %c0_6] : memref<16x128xf32, #tpu.memory_space<vmem>>, vector<8x128xf32>
      %20 = arith.addi %5, %14 : i32
      %21 = tpu.iota {dimensions = array<i32: 0>} : vector<8x128xi32>
      %22 = vector.broadcast %20 : i32 to vector<8x128xi32>
      %23 = arith.addi %22, %21 : vector<8x128xi32>
      %c16_i32_7 = arith.constant 16 : i32
      %24 = vector.broadcast %c16_i32_7 : i32 to vector<8x128xi32>
      %25 = arith.cmpi slt, %23, %24 : vector<8x128xi32>
      %cst_8 = arith.constant 0.000000e+00 : f32
      %26 = vector.broadcast %cst_8 : f32 to vector<8x128xf32>
      %27 = arith.select %25, %17, %26 : vector<8x128xi1>, vector<8x128xf32>
      %cst_9 = arith.constant 0.000000e+00 : f32
      %28 = vector.broadcast %cst_9 : f32 to vector<8x128xf32>
      %29 = arith.select %25, %19, %28 : vector<8x128xi1>, vector<8x128xf32>
      %30 = math.log %27 : vector<8x128xf32>
      %cst_10 = arith.constant -1.000000e+02 : f32
      %31 = vector.broadcast %cst_10 : f32 to vector<8x128xf32>
      %32 = arith.maximumf %30, %31 : vector<8x128xf32>
      %cst_11 = arith.constant 1.000000e+00 : f32
      %33 = vector.broadcast %cst_11 : f32 to vector<8x128xf32>
      %34 = arith.subf %33, %27 : vector<8x128xf32>
      %35 = math.log %34 : vector<8x128xf32>
      %cst_12 = arith.constant -1.000000e+02 : f32
      %36 = vector.broadcast %cst_12 : f32 to vector<8x128xf32>
      %37 = arith.maximumf %35, %36 : vector<8x128xf32>
      %38 = arith.subf %32, %37 : vector<8x128xf32>
      %39 = arith.mulf %29, %38 : vector<8x128xf32>
      %40 = arith.addf %37, %39 : vector<8x128xf32>
      %cst_13 = arith.constant 0.000000e+00 : f32
      %41 = vector.broadcast %cst_13 : f32 to vector<8x128xf32>
      %42 = arith.subf %41, %40 : vector<8x128xf32>
      %43 = arith.mulf %27, %29 : vector<8x128xf32>
      %44 = arith.addf %13, %43 : vector<8x128xf32>
      %45 = arith.addf %27, %29 : vector<8x128xf32>
      %46 = arith.addf %13, %45 : vector<8x128xf32>
      %47 = arith.addf %13, %42 : vector<8x128xf32>
      %c1_i32_14 = arith.constant 1 : i32
      %c8_i32_15 = arith.constant 8 : i32
      %48 = arith.muli %c1_i32_14, %c8_i32_15 : i32
      %49 = tpu.assume_multiple %48, 8 : i32
      %50 = arith.index_cast %49 : i32 to index
      %c0_16 = arith.constant 0 : index
      %51 = vector.load %arg2[%50, %c0_16] : memref<16x128xf32, #tpu.memory_space<vmem>>, vector<8x128xf32>
      %52 = arith.index_cast %49 : i32 to index
      %c0_17 = arith.constant 0 : index
      %53 = vector.load %arg3[%52, %c0_17] : memref<16x128xf32, #tpu.memory_space<vmem>>, vector<8x128xf32>
      %54 = arith.addi %5, %48 : i32
      %55 = tpu.iota {dimensions = array<i32: 0>} : vector<8x128xi32>
      %56 = vector.broadcast %54 : i32 to vector<8x128xi32>
      %57 = arith.addi %56, %55 : vector<8x128xi32>
      %c16_i32_18 = arith.constant 16 : i32
      %58 = vector.broadcast %c16_i32_18 : i32 to vector<8x128xi32>
      %59 = arith.cmpi slt, %57, %58 : vector<8x128xi32>
      %cst_19 = arith.constant 0.000000e+00 : f32
      %60 = vector.broadcast %cst_19 : f32 to vector<8x128xf32>
      %61 = arith.select %59, %51, %60 : vector<8x128xi1>, vector<8x128xf32>
      %cst_20 = arith.constant 0.000000e+00 : f32
      %62 = vector.broadcast %cst_20 : f32 to vector<8x128xf32>
      %63 = arith.select %59, %53, %62 : vector<8x128xi1>, vector<8x128xf32>
      %64 = math.log %61 : vector<8x128xf32>
      %cst_21 = arith.constant -1.000000e+02 : f32
      %65 = vector.broadcast %cst_21 : f32 to vector<8x128xf32>
      %66 = arith.maximumf %64, %65 : vector<8x128xf32>
      %cst_22 = arith.constant 1.000000e+00 : f32
      %67 = vector.broadcast %cst_22 : f32 to vector<8x128xf32>
      %68 = arith.subf %67, %61 : vector<8x128xf32>
      %69 = math.log %68 : vector<8x128xf32>
      %cst_23 = arith.constant -1.000000e+02 : f32
      %70 = vector.broadcast %cst_23 : f32 to vector<8x128xf32>
      %71 = arith.maximumf %69, %70 : vector<8x128xf32>
      %72 = arith.subf %66, %71 : vector<8x128xf32>
      %73 = arith.mulf %63, %72 : vector<8x128xf32>
      %74 = arith.addf %71, %73 : vector<8x128xf32>
      %cst_24 = arith.constant 0.000000e+00 : f32
      %75 = vector.broadcast %cst_24 : f32 to vector<8x128xf32>
      %76 = arith.subf %75, %74 : vector<8x128xf32>
      %77 = arith.mulf %61, %63 : vector<8x128xf32>
      %78 = arith.addf %44, %77 : vector<8x128xf32>
      %79 = arith.addf %61, %63 : vector<8x128xf32>
      %80 = arith.addf %46, %79 : vector<8x128xf32>
      %81 = arith.addf %47, %76 : vector<8x128xf32>
      %c2_i32 = arith.constant 2 : i32
      %c0_25 = arith.constant 0 : index
      %c0_26 = arith.constant 0 : index
      %c0_27 = arith.constant 0 : index
      %c0_28 = arith.constant 0 : index
      %82 = vector.load %arg4[%c0_25, %c0_26, %c0_27, %c0_28] : memref<1x3x8x128xf32, #tpu.memory_space<vmem>>, vector<1x1x8x128xf32>
      %83 = vector.shape_cast %82 : vector<1x1x8x128xf32> to vector<8x128xf32>
      %84 = arith.addf %83, %78 : vector<8x128xf32>
      %c0_29 = arith.constant 0 : index
      %c0_30 = arith.constant 0 : index
      %c0_31 = arith.constant 0 : index
      %c0_32 = arith.constant 0 : index
      %85 = vector.load %arg4[%c0_29, %c0_30, %c0_31, %c0_32] : memref<1x3x8x128xf32, #tpu.memory_space<vmem>>, vector<1x1x8x128xf32>
      %86 = vector.shape_cast %85 : vector<1x1x8x128xf32> to vector<8x128xf32>
      %87 = vector.shape_cast %84 : vector<8x128xf32> to vector<1x1x8x128xf32>
      tpu.vector_store %arg4[%c0_29, %c0_30, %c0_31, %c0_32], %87 {strides = array<i32>} : memref<1x3x8x128xf32, #tpu.memory_space<vmem>>, vector<1x1x8x128xf32>,
      %c0_33 = arith.constant 0 : index
      %c1 = arith.constant 1 : index
      %c0_34 = arith.constant 0 : index
      %c0_35 = arith.constant 0 : index
      %88 = vector.load %arg4[%c0_33, %c1, %c0_34, %c0_35] : memref<1x3x8x128xf32, #tpu.memory_space<vmem>>, vector<1x1x8x128xf32>
      %89 = vector.shape_cast %88 : vector<1x1x8x128xf32> to vector<8x128xf32>
      %90 = arith.addf %89, %80 : vector<8x128xf32>
      %c0_36 = arith.constant 0 : index
      %c1_37 = arith.constant 1 : index
      %c0_38 = arith.constant 0 : index
      %c0_39 = arith.constant 0 : index
      %91 = vector.load %arg4[%c0_36, %c1_37, %c0_38, %c0_39] : memref<1x3x8x128xf32, #tpu.memory_space<vmem>>, vector<1x1x8x128xf32>
      %92 = vector.shape_cast %91 : vector<1x1x8x128xf32> to vector<8x128xf32>
      %93 = vector.shape_cast %90 : vector<8x128xf32> to vector<1x1x8x128xf32>
      tpu.vector_store %arg4[%c0_36, %c1_37, %c0_38, %c0_39], %93 {strides = array<i32>} : memref<1x3x8x128xf32, #tpu.memory_space<vmem>>, vector<1x1x8x128xf32>,
      %c0_40 = arith.constant 0 : index
      %c2 = arith.constant 2 : index
      %c0_41 = arith.constant 0 : index
      %c0_42 = arith.constant 0 : index
      %94 = vector.load %arg4[%c0_40, %c2, %c0_41, %c0_42] : memref<1x3x8x128xf32, #tpu.memory_space<vmem>>, vector<1x1x8x128xf32>
      %95 = vector.shape_cast %94 : vector<1x1x8x128xf32> to vector<8x128xf32>
      %96 = arith.addf %95, %81 : vector<8x128xf32>
      %c0_43 = arith.constant 0 : index
      %c2_44 = arith.constant 2 : index
      %c0_45 = arith.constant 0 : index
      %c0_46 = arith.constant 0 : index
      %97 = vector.load %arg4[%c0_43, %c2_44, %c0_45, %c0_46] : memref<1x3x8x128xf32, #tpu.memory_space<vmem>>, vector<1x1x8x128xf32>
      %98 = vector.shape_cast %97 : vector<1x1x8x128xf32> to vector<8x128xf32>
      %99 = vector.shape_cast %96 : vector<8x128xf32> to vector<1x1x8x128xf32>
      tpu.vector_store %arg4[%c0_43, %c2_44, %c0_45, %c0_46], %99 {strides = array<i32>} : memref<1x3x8x128xf32, #tpu.memory_space<vmem>>, vector<1x1x8x128xf32>,
    } else {
    }
    return
  }
  func.func @transform_0(%arg0: i32, %arg1: i32) -> (i32, i32) {
    %c1_i32 = arith.constant 1 : i32
    %0 = arith.muli %arg0, %c1_i32 : i32
    %1 = arith.addi %0, %arg1 : i32
    %c0_i32 = arith.constant 0 : i32
    %2 = arith.minsi %1, %c0_i32 : i32
    %c0_i32_0 = arith.constant 0 : i32
    %c0_i32_1 = arith.constant 0 : i32
    return %2, %c0_i32_0 : i32, i32
  }
  func.func @transform_1(%arg0: i32, %arg1: i32) -> (i32, i32) {
    %c1_i32 = arith.constant 1 : i32
    %0 = arith.muli %arg0, %c1_i32 : i32
    %1 = arith.addi %0, %arg1 : i32
    %c0_i32 = arith.constant 0 : i32
    %2 = arith.minsi %1, %c0_i32 : i32
    %c0_i32_0 = arith.constant 0 : i32
    %c0_i32_1 = arith.constant 0 : i32
    return %2, %c0_i32_0 : i32, i32
  }
  func.func @transform_2(%arg0: i32, %arg1: i32) -> (i32, i32, i32, i32) {
    %c0_i32 = arith.constant 0 : i32
    %c0_i32_0 = arith.constant 0 : i32
    %c0_i32_1 = arith.constant 0 : i32
    %c0_i32_2 = arith.constant 0 : i32
    return %arg0, %c0_i32, %c0_i32_0, %c0_i32_1 : i32, i32, i32, i32
  }
}

</mosaic_0001>

<llo_original>
// kernel: tpu_custom_call.1
$region0: #{tpu_custom_call.1}
  #allocation0 [shape = 'u32[]', space=smem, size = 0x4, offset = 0x4, fixed_abs, tag = 'smem constant byte address 0x4 - core index']
  #allocation1 [shape = 'u32[144,128]{1,0:T(1,128)}', space=vmem, size = 0x12000, scoped, tag = 'internal scratch']
  %s0 = inlined_call_operand.hbm [shape: f32[16,128], index: 0, kind: input, shape index: {}]
  %s1 = inlined_call_operand.hbm [shape: f32[16,128], index: 1, kind: input, shape index: {}]
  %s2 = inlined_call_operand.hbm [shape: f32[1,3,8,128], index: 2, kind: output, shape index: {}]
  %s3 = sld [smem:[#allocation0]]
  $region38: #{tpu_custom_call.1} parent=0
    _
  %s5 = ssub.s32 1, %s3
  %s6 = scalar_select 0, %s5, %s3
  $region1: #{tpu_custom_call.1} parent=0
    #allocation2 [shape = 'u8[8192]{0}', space=vmem, size = 0x2000, scoped, tag = 'input window, operand 0, single buffered']
    #allocation3 [shape = 's32[1]{0}', space=sflag, size = 0x4, scoped, tag = 'scoped memory for tpu_custom_call.1']
    #allocation4 [shape = 's32[1]{0}', space=sflag, size = 0x4, scoped, tag = 'scoped memory for tpu_custom_call.1']
    #allocation5 [shape = 'u8[8192]{0}', space=vmem, size = 0x2000, scoped, tag = 'input window, operand 1, single buffered']
    #allocation6 [shape = 's32[1]{0}', space=sflag, size = 0x4, scoped, tag = 'scoped memory for tpu_custom_call.1']
    #allocation7 [shape = 'u8[12288]{0}', space=vmem, size = 0x3000, scoped, tag = 'output window, operand 0, single buffered']
    %7 = vsyncpa [#allocation3], 0
    %8 = vsyncpa [#allocation6], 0
    %9 = vsyncpa [#allocation4], 0
    // Predicated region
    $region2: #{tpu_custom_call.1} parent=1 // pred_check
      _
    $region3: #{tpu_custom_call.1} parent=1 // pred_check_branch
      %11 = sbr.rel (0) target = $region5
    $region4: #{tpu_custom_call.1} parent=1 // pred_region
      %s12 = sadd.s32 0, 0
      %p13 = scmp.lt.s32.totalorder %s12, 0
      %s14 = scalar_select %p13, %s12, 0
      %s15 = smul.u32 2, %s14
      %s17 = ssub.s32 256, 256
      %18 = vsyncadd [#allocation3], %s17
      %s19 = smul.addr %s15, 128
      %s20 = scalar_lea.hbm %s0, %s19
      %s21 = sshll.u32 [#allocation2], 4
      %s22 = int_to_ptr.vmem [resolvable:$true] %s21
      %27 = dma.hbm_to_vmem [thread:$0]  %s20, 256, %s22, [#allocation3], 128, 128, 8
    $region5: #{tpu_custom_call.1} parent=1 // pred_fallthru
      _
    // Predicated region
    $region6: #{tpu_custom_call.1} parent=1 // pred_check
      _
    $region7: #{tpu_custom_call.1} parent=1 // pred_check_branch
      %29 = sbr.rel (0) target = $region9
    $region8: #{tpu_custom_call.1} parent=1 // pred_region
      %s30 = sadd.s32 0, 0
      %p31 = scmp.lt.s32.totalorder %s30, 0
      %s32 = scalar_select %p31, %s30, 0
      %s33 = smul.u32 2, %s32
      %s35 = ssub.s32 256, 256
      %36 = vsyncadd [#allocation6], %s35
      %s37 = smul.addr %s33, 128
      %s38 = scalar_lea.hbm %s1, %s37
      %s39 = sshll.u32 [#allocation5], 4
      %s40 = int_to_ptr.vmem [resolvable:$true] %s39
      %45 = dma.hbm_to_vmem [thread:$0]  %s38, 256, %s40, [#allocation6], 128, 128, 8
    $region9: #{tpu_custom_call.1} parent=1 // pred_fallthru
      _
    // Predicated region
    $region10: #{tpu_custom_call.1} parent=1 // pred_check
      _
    $region11: #{tpu_custom_call.1} parent=1 // pred_check_branch
      %47 = sbr.rel (0) target = $region13
    $region12: #{tpu_custom_call.1} parent=1 // pred_region
      %48 = dma.done [#allocation3], 256
    $region13: #{tpu_custom_call.1} parent=1 // pred_fallthru
      _
    // Predicated region
    $region14: #{tpu_custom_call.1} parent=1 // pred_check
      _
    $region15: #{tpu_custom_call.1} parent=1 // pred_check_branch
      %50 = sbr.rel (0) target = $region17
    $region16: #{tpu_custom_call.1} parent=1 // pred_region
      %51 = dma.done [#allocation6], 256
    $region17: #{tpu_custom_call.1} parent=1 // pred_fallthru
      _
    %s52 = sadd.s32 0, 0
    %p53 = scmp.lt.s32.totalorder %s52, 0
    %s54 = scalar_select %p53, %s52, 0
    %s55 = smul.u32 2, %s54
    %s56 = sadd.s32 0, 0
    %p57 = scmp.lt.s32.totalorder %s56, 0
    %s58 = scalar_select %p57, %s56, 0
    %s59 = smul.u32 2, %s58
    %p60 = scmp.eq.s32.totalorder 0, 0
    // Predicated region
    $region18: #{tpu_custom_call.1} parent=1 // pred_check
      %p61 = pneg %p60
    $region19: #{tpu_custom_call.1} parent=1 // pred_check_branch
      %63 = sbr.rel (%p61) target = $region21
    $region20: #{tpu_custom_call.1} parent=1 // pred_region
      %64 = vst [vmem:[#allocation7] sm:$0xff] 0.0
      %65 = vst [vmem:[#allocation7 + $0x8] sm:$0xff] 0.0
      %66 = vst [vmem:[#allocation7 + $0x10] sm:$0xff] 0.0
    $region21: #{tpu_custom_call.1} parent=1 // pred_fallthru
      _
    %s67 = sadd.s32 0, 0
    %s68 = smul.u32 %s67, 16
    %s69 = sadd.s32 %s68, 16
    %p70 = scmp.le.s32.totalorder %s69, 16
    // Predicated region
    $region22: #{tpu_custom_call.1} parent=1 // pred_check
      %p71 = pneg %p70
    $region23: #{tpu_custom_call.1} parent=1 // pred_check_branch
      %73 = sbr.rel (%p71) target = $region25
    $region24: #{tpu_custom_call.1} parent=1 // pred_region
      %v74 = vld [vmem:[#allocation2] sm:$0xff]
      %v75 = vld [vmem:[#allocation5] sm:$0xff]
      %v76 = vlog2.pop %v74
      %v77 = vmul.f32 %v76, 0.6931472
      %v78 = vmax.f32 %v77, -100.0
      %v79 = vsub.f32 1.0, %v74
      %v80 = vlog2.pop %v79
      %v81 = vmul.f32 %v80, 0.6931472
      %v82 = vmax.f32 %v81, -100.0
      %v83 = vsub.f32 %v78, %v82
      %v84 = vmul.f32 %v75, %v83
      %v85 = vadd.f32 %v82, %v84
      %v86 = vsub.f32 0.0, %v85
      %v87 = vmul.f32 %v74, %v75
      %v88 = vadd.f32 %v87, 0.0
      %v89 = vadd.f32 %v74, %v75
      %v90 = vadd.f32 %v89, 0.0
      %v91 = vadd.f32 %v86, 0.0
      %s92 = scalar_lea.vmem [#allocation2], 8
      %v93 = vld [vmem:[%s92] sm:$0xff]
      %s94 = scalar_lea.vmem [#allocation5], 8
      %v95 = vld [vmem:[%s94] sm:$0xff]
      %v96 = vlog2.pop %v93
      %v97 = vmul.f32 %v96, 0.6931472
      %v98 = vmax.f32 %v97, -100.0
      %v99 = vsub.f32 1.0, %v93
      %v100 = vlog2.pop %v99
      %v101 = vmul.f32 %v100, 0.6931472
      %v102 = vmax.f32 %v101, -100.0
      %v103 = vsub.f32 %v98, %v102
      %v104 = vmul.f32 %v95, %v103
      %v105 = vadd.f32 %v102, %v104
      %v106 = vsub.f32 0.0, %v105
      %v107 = vmul.f32 %v93, %v95
      %v108 = vadd.f32 %v88, %v107
      %v109 = vadd.f32 %v93, %v95
      %v110 = vadd.f32 %v90, %v109
      %v111 = vadd.f32 %v91, %v106
      %v112 = vld [vmem:[#allocation7] sm:$0xff]
      %v113 = vadd.f32 %v112, %v108
      %114 = vst [vmem:[#allocation7] sm:$0xff] %v113
      %s115 = scalar_lea.vmem [#allocation7], 8
      %v116 = vld [vmem:[%s115] sm:$0xff]
      %v117 = vadd.f32 %v116, %v110
      %118 = vst [vmem:[%s115] sm:$0xff] %v117
      %s119 = scalar_lea.vmem [#allocation7], 16
      %v120 = vld [vmem:[%s119] sm:$0xff]
      %v121 = vadd.f32 %v120, %v111
      %122 = vst [vmem:[%s119] sm:$0xff] %v121
    $region25: #{tpu_custom_call.1} parent=1 // pred_fallthru
      _
    %p123 = scmp.gt.s32.totalorder %s69, 16
    // Predicated region
    $region26: #{tpu_custom_call.1} parent=1 // pred_check
      %p124 = pneg %p123
    $region27: #{tpu_custom_call.1} parent=1 // pred_check_branch
      %126 = sbr.rel (%p124) target = $region29
    $region28: #{tpu_custom_call.1} parent=1 // pred_region
      %v127 = vld [vmem:[#allocation2] sm:$0xff]
      %v128 = vld [vmem:[#allocation5] sm:$0xff]
      %v129 = vlaneseq
      %v130 = vshrl.u32 %v129, 7
      %v131 = vstv %s68
      %v132 = vadd.s32 %v131, %v130
      %vm133 = vcmp.lt.s32.totalorder %v132, 16
      %v134 = vsel %vm133, %v127, 0.0
      %v135 = vsel %vm133, %v128, 0.0
      %v136 = vlog2.pop %v134
      %v137 = vmul.f32 %v136, 0.6931472
      %v138 = vmax.f32 %v137, -100.0
      %v139 = vsub.f32 1.0, %v134
      %v140 = vlog2.pop %v139
      %v141 = vmul.f32 %v140, 0.6931472
      %v142 = vmax.f32 %v141, -100.0
      %v143 = vsub.f32 %v138, %v142
      %v144 = vmul.f32 %v135, %v143
      %v145 = vadd.f32 %v142, %v144
      %v146 = vsub.f32 0.0, %v145
      %v147 = vmul.f32 %v134, %v135
      %v148 = vadd.f32 %v147, 0.0
      %v149 = vadd.f32 %v134, %v135
      %v150 = vadd.f32 %v149, 0.0
      %v151 = vadd.f32 %v146, 0.0
      %s152 = scalar_lea.vmem [#allocation2], 8
      %v153 = vld [vmem:[%s152] sm:$0xff]
      %s154 = scalar_lea.vmem [#allocation5], 8
      %v155 = vld [vmem:[%s154] sm:$0xff]
      %s156 = sadd.s32 %s68, 8
      %v157 = vstv %s156
      %v158 = vadd.s32 %v157, %v130
      %vm159 = vcmp.lt.s32.totalorder %v158, 16
      %v160 = vsel %vm159, %v153, 0.0
      %v161 = vsel %vm159, %v155, 0.0
      %v162 = vlog2.pop %v160
      %v163 = vmul.f32 %v162, 0.6931472
      %v164 = vmax.f32 %v163, -100.0
      %v165 = vsub.f32 1.0, %v160
      %v166 = vlog2.pop %v165
      %v167 = vmul.f32 %v166, 0.6931472
      %v168 = vmax.f32 %v167, -100.0
      %v169 = vsub.f32 %v164, %v168
      %v170 = vmul.f32 %v161, %v169
      %v171 = vadd.f32 %v168, %v170
      %v172 = vsub.f32 0.0, %v171
      %v173 = vmul.f32 %v160, %v161
      %v174 = vadd.f32 %v148, %v173
      %v175 = vadd.f32 %v160, %v161
      %v176 = vadd.f32 %v150, %v175
      %v177 = vadd.f32 %v151, %v172
      %v178 = vld [vmem:[#allocation7] sm:$0xff]
      %v179 = vadd.f32 %v178, %v174
      %180 = vst [vmem:[#allocation7] sm:$0xff] %v179
      %s181 = scalar_lea.vmem [#allocation7], 8
      %v182 = vld [vmem:[%s181] sm:$0xff]
      %v183 = vadd.f32 %v182, %v176
      %184 = vst [vmem:[%s181] sm:$0xff] %v183
      %s185 = scalar_lea.vmem [#allocation7], 16
      %v186 = vld [vmem:[%s185] sm:$0xff]
      %v187 = vadd.f32 %v186, %v177
      %188 = vst [vmem:[%s185] sm:$0xff] %v187
    $region29: #{tpu_custom_call.1} parent=1 // pred_fallthru
      _
    // Predicated region
    $region30: #{tpu_custom_call.1} parent=1 // pred_check
      _
    $region31: #{tpu_custom_call.1} parent=1 // pred_check_branch
      %190 = sbr.rel (0) target = $region33
    $region32: #{tpu_custom_call.1} parent=1 // pred_region
      %s192 = ssub.s32 384, 384
      %193 = vsyncadd [#allocation4], %s192
      %s194 = sshll.u32 [#allocation7], 4
      %s195 = int_to_ptr.vmem [resolvable:$true] %s194
      %200 = dma.vmem_to_hbm [thread:$0]  %s195, 384, %s2, [#allocation4], 128, 128, 8
    $region33: #{tpu_custom_call.1} parent=1 // pred_fallthru
      _
    // Predicated region
    $region34: #{tpu_custom_call.1} parent=1 // pred_check
      _
    $region35: #{tpu_custom_call.1} parent=1 // pred_check_branch
      %202 = sbr.rel (0) target = $region37
    $region36: #{tpu_custom_call.1} parent=1 // pred_region
      %203 = dma.done [#allocation4], 384
    $region37: #{tpu_custom_call.1} parent=1 // pred_fallthru
      _
    %204 = vsyncpa [#allocation3], 1
    %205 = vsyncpa [#allocation6], 1
    %206 = vsyncpa [#allocation4], 1

</llo_original>
